<compile_context>
chip_gen: v5e
topology: v5e:2x2
jax: 0.10.0
libtpu: 0.0.40
codegen_flags: <defaults>
</compile_context>

<pallas_src>
import math
from functools import partial

import jax
import jax.numpy as jnp
from jax.experimental import pallas as pl
from jax.experimental.pallas import tpu as pltpu


# Feed the MXU bf16 inputs with f32 accumulation (biggest measured lever).
# Set False if bit-tighter f32 parity with the PyTorch module is required.
USE_BF16_MXU = True


# ----------------------------- ALiBi slopes --------------------------------
def get_slopes(n):
    def get_slopes_power_of_2(n):
        start = 2 ** (-2 ** (-(math.log2(n) - 3)))
        ratio = start
        return [start * ratio ** i for i in range(n)]

    if math.log2(n).is_integer():
        return get_slopes_power_of_2(n)
    closest = 2 ** math.floor(math.log2(n))
    return (get_slopes_power_of_2(closest)
            + get_slopes(2 * closest)[0::2][: n - closest])


# ----------------------------- VMEM budgeting ------------------------------
_VMEM_CAP = None


def _vmem_capacity_bytes():
    global _VMEM_CAP
    if _VMEM_CAP is None:
        try:
            _VMEM_CAP = int(pltpu.get_tpu_info().vmem_capacity_bytes)
        except Exception:
            _VMEM_CAP = 64 * 1024 * 1024   # conservative (v7x-sized) fallback
    return _VMEM_CAP


def _vmem_limit_bytes():
    # v5e/v6e (128 MiB physical): ask for 64 MiB scoped; v7x (64 MiB): leave
    # headroom for Mosaic internal scratch (~48 MiB ask).
    return int(min(64 * 1024 * 1024, _vmem_capacity_bytes() * 3 // 4))


def _big_vmem():
    return _vmem_capacity_bytes() >= 100 * 1024 * 1024


def _pick_tile(dim, candidates):
    """Largest candidate tile that evenly divides dim; fall back to full dim."""
    for c in candidates:
        if c <= dim and dim % c == 0:
            return c
    return dim


def _pick_group(num_heads, head_dim):
    """Smallest head-group G (divisor of H) with G*hd a multiple of 128, so the
    attention output tile is lane-dense; fall back to all heads (width == C)."""
    for g in range(1, num_heads + 1):
        if num_heads % g == 0 and (g * head_dim) % 128 == 0:
            return g
    return num_heads


# --------------------------- tiled linear kernel ----------------------------
def _linear_kernel(x_ref, w_ref, b_ref, o_ref, acc_ref):
    k = pl.program_id(2)

    @pl.when(k == 0)
    def _():
        acc_ref[...] = jnp.zeros_like(acc_ref)

    # bf16 x bf16 -> f32 accumulate on the MXU when USE_BF16_MXU.
    acc_ref[...] += jnp.dot(x_ref[...], w_ref[...],
                            preferred_element_type=jnp.float32)

    @pl.when(k == pl.num_programs(2) - 1)
    def _():
        o_ref[...] = (acc_ref[...] + b_ref[...]).astype(o_ref.dtype)


def linear_pallas(x2d, w, b):
    """y = x2d @ w + b with (M,N,K) tiling and a VMEM f32 accumulator."""
    M, K = x2d.shape
    _, N = w.shape
    out_dtype = x2d.dtype
    cdt = jnp.bfloat16 if USE_BF16_MXU else x2d.dtype

    x_in = x2d.astype(cdt)
    w_in = w.astype(cdt)
    b_in = b.reshape(1, N).astype(jnp.float32)

    big = _big_vmem()
    tm = _pick_tile(M, (1024, 512, 256, 128) if big else (512, 256, 128))
    tn = _pick_tile(N, (1024, 512, 256, 128) if big else (512, 256, 128))
    tk = _pick_tile(K, (2048, 1024, 512, 256) if big else (1024, 512, 256))
    grid = (M // tm, N // tn, K // tk)

    isz = jnp.dtype(cdt).itemsize
    cost = pl.CostEstimate(
        flops=2 * M * N * K,
        transcendentals=0,
        # include the x / W re-streaming across the j / i grid axes
        bytes_accessed=int(isz * (M * K * (N // tn) + K * N * (M // tm))
                           + 4 * M * N))

    return pl.pallas_call(
        _linear_kernel,
        out_shape=jax.ShapeDtypeStruct((M, N), out_dtype),
        grid=grid,
        in_specs=[
            pl.BlockSpec((tm, tk), lambda i, j, k: (i, k)),
            pl.BlockSpec((tk, tn), lambda i, j, k: (k, j)),
            pl.BlockSpec((1, tn), lambda i, j, k: (0, j)),
        ],
        out_specs=pl.BlockSpec((tm, tn), lambda i, j, k: (i, j)),
        scratch_shapes=[pltpu.VMEM((tm, tn), jnp.float32)],
        compiler_params=pltpu.CompilerParams(
            dimension_semantics=("parallel", "parallel", "arbitrary"),
            vmem_limit_bytes=_vmem_limit_bytes()),
        cost_estimate=cost,
    )(x_in, w_in, b_in)


# ------------------------ flash-style attention kernel ----------------------
def _flash_attn_kernel(slopes_ref, q_ref, k_ref, v_ref, o_ref,
                       tmpl_sc, m_sc, l_sc, acc_sc, *, group):
    G = group
    gi = pl.program_id(1)
    qi = pl.program_id(2)
    ki = pl.program_id(3)

    _, tq, hd = q_ref.shape
    tkv = k_ref.shape[1]

    @pl.when(ki == 0)
    def _():
        # ALiBi template hoisted out of the kv loop: tmpl[i, j] = (j - i) local.
        rows = jax.lax.broadcasted_iota(jnp.int32, (tq, tkv), 0)
        cols = jax.lax.broadcasted_iota(jnp.int32, (tq, tkv), 1)
        tmpl_sc[...] = (cols - rows).astype(jnp.float32)
        m_sc[...] = jnp.full_like(m_sc, -jnp.inf)
        l_sc[...] = jnp.zeros_like(l_sc)
        acc_sc[...] = jnp.zeros_like(acc_sc)

    # global (col - row) = tmpl + (ki*tkv - qi*tq); bias = slope*min(col-row, 0)
    # == -slope*max(row-col, 0).  NOTE: no causal mask, matching the reference
    # (it builds a causal attn_bias but never applies it).
    off = (ki * tkv - qi * tq).astype(jnp.float32)
    dist = jnp.minimum(tmpl_sc[...] + off, 0.0)               # (tq, tkv)

    g0 = gi * G
    # Static unroll over the (small) head group: each head is a clean 2-D tile;
    # the grouping exists so the HBM blocks and the output tile are lane-dense.
    for g in range(G):
        slope = slopes_ref[g0 + g]                            # scalar from SMEM
        # q was pre-scaled by 1/sqrt(hd) in the wrapper (fused into its cast).
        s = jax.lax.dot_general(q_ref[g], k_ref[g],
                                (((1,), (1,)), ((), ())),
                                preferred_element_type=jnp.float32)  # (tq, tkv)
        s = s + slope * dist

        m_prev = m_sc[g]                                      # (tq, 128) lane-wide
        m_new = jnp.maximum(m_prev, jnp.max(s, axis=-1, keepdims=True))
        alpha = jnp.exp(m_prev - m_new)                       # full-lane VALU/EUP
        p = jnp.exp(s - m_new[:, :1])                         # (tq, tkv)
        l_sc[g] = alpha * l_sc[g] + jnp.sum(p, axis=-1, keepdims=True)
        acc_sc[g] = alpha[:, :1] * acc_sc[g] + jnp.dot(
            p.astype(v_ref.dtype), v_ref[g],
            preferred_element_type=jnp.float32)
        m_sc[g] = m_new

    @pl.when(ki == pl.num_programs(3) - 1)
    def _():
        # Write back directly in (B, T, C) layout: heads packed along lanes so
        # the output block is (tq, G*hd) lane-dense and the post-attention
        # transpose is eliminated.  Exact divide (once per q tile, cheap).
        for g in range(G):
            inv_l = 1.0 / l_sc[g][:, :1]
            o_ref[:, g * hd:(g + 1) * hd] = (acc_sc[g] * inv_l).astype(o_ref.dtype)


def flash_attention_pallas(q, k, v, slopes, scale):
    """q,k,v: (B,H,T,hd) -> (B,T,C=H*hd) output of ALiBi-biased softmax attention."""
    B, H, T, hd = q.shape
    C = H * hd
    out_dtype = q.dtype
    cdt = jnp.bfloat16 if USE_BF16_MXU else q.dtype

    G = _pick_group(H, hd)
    cands = (1024, 512, 256, 128) if _big_vmem() else (512, 256, 128)
    tq = _pick_tile(T, cands)
    tkv = _pick_tile(T, cands)
    nq, nk = T // tq, T // tkv
    c_blk = G * hd

    # Fold 1/sqrt(hd) into q here (fuses with the cast/transpose producing q),
    # applied in f32 before the bf16 rounding.
    q_in = (q * scale).astype(cdt)
    k_in = k.astype(cdt)
    v_in = v.astype(cdt)
    slopes_in = slopes.astype(jnp.float32)                   # (H,) -> SMEM

    isz = jnp.dtype(cdt).itemsize
    cost = pl.CostEstimate(
        flops=4 * B * H * T * T * hd,
        transcendentals=B * H * T * T,
        # q read once, K/V re-streamed nq times, f32 output write.
        bytes_accessed=int(isz * B * H * T * hd * (1 + 2 * nq) + 4 * B * T * C))

    kern = partial(_flash_attn_kernel, group=G)

    # NOTE (v7x): parallel extent = B*(H//G)*nq >= 2 for B >= 2, so both
    # TensorCores get work; ki stays the trailing "arbitrary" reduction axis.
    return pl.pallas_call(
        kern,
        out_shape=jax.ShapeDtypeStruct((B, T, C), out_dtype),
        grid=(B, H // G, nq, nk),
        in_specs=[
            pl.BlockSpec(memory_space=pltpu.MemorySpace.SMEM),   # slopes (H,)
            pl.BlockSpec((None, G, tq, hd), lambda b, g, qi, ki: (b, g, qi, 0)),
            pl.BlockSpec((None, G, tkv, hd), lambda b, g, qi, ki: (b, g, ki, 0)),
            pl.BlockSpec((None, G, tkv, hd), lambda b, g, qi, ki: (b, g, ki, 0)),
        ],
        out_specs=pl.BlockSpec((None, tq, c_blk),
                               lambda b, g, qi, ki: (b, qi, g)),
        scratch_shapes=[
            pltpu.VMEM((tq, tkv), jnp.float32),      # ALiBi (col-row) template
            pltpu.VMEM((G, tq, 128), jnp.float32),   # running max m (lane-wide)
            pltpu.VMEM((G, tq, 128), jnp.float32),   # running sum l (lane-wide)
            pltpu.VMEM((G, tq, hd), jnp.float32),    # output accumulator
        ],
        compiler_params=pltpu.CompilerParams(
            dimension_semantics=("parallel", "parallel", "parallel", "arbitrary"),
            vmem_limit_bytes=_vmem_limit_bytes()),
        cost_estimate=cost,
    )(slopes_in, q_in, k_in, v_in)


# ------------------------------ MHA forward --------------------------------
def mha_forward(params, x, num_heads):
    B, T, C = x.shape
    hd = C // num_heads

    # QKV projection (tiled Pallas matmul, f32 output).
    qkv = linear_pallas(x.reshape(B * T, C), params["w_qkv"], params["b_qkv"])
    qkv = qkv.reshape(B, T, 3, num_heads, hd)
    q = jnp.transpose(qkv[:, :, 0], (0, 2, 1, 3))   # (B, H, T, hd)
    k = jnp.transpose(qkv[:, :, 1], (0, 2, 1, 3))
    v = jnp.transpose(qkv[:, :, 2], (0, 2, 1, 3))

    slopes = jnp.asarray(get_slopes(num_heads), dtype=jnp.float32)  # (H,)
    scale = 1.0 / math.sqrt(hd)

    # Attention writes its result directly in (B, T, C) layout.
    y = flash_attention_pallas(q, k, v, slopes, scale)              # (B, T, C)

    y = linear_pallas(y.reshape(B * T, C), params["w_proj"], params["b_proj"])
    return y.reshape(B, T, C)


# ----------------------------- pure-JAX reference ---------------------------
def mha_reference(params, x, num_heads):
    B, T, C = x.shape
    hd = C // num_heads
    qkv = x.reshape(B * T, C) @ params["w_qkv"] + params["b_qkv"]
    qkv = qkv.reshape(B, T, 3 * C)
    q, k, v = jnp.split(qkv, 3, axis=2)
    rs = lambda t: t.reshape(B, T, num_heads, hd).transpose(0, 2, 1, 3)
    q, k, v = rs(q), rs(k), rs(v)
    slopes = jnp.asarray(get_slopes(num_heads), dtype=jnp.float32)
    idx = jnp.arange(T)
    ali = -jnp.maximum(idx[:, None] - idx[None, :], 0).astype(jnp.float32)
    bias = slopes[:, None, None] * ali[None, :, :]
    s = jnp.einsum("bhqd,bhkd->bhqk", q, k) / math.sqrt(hd) + bias[None]
    attn = jax.nn.softmax(s, axis=-1)
    y = jnp.einsum("bhqk,bhkd->bhqd", attn, v)
    y = y.transpose(0, 2, 1, 3).reshape(B * T, C)
    y = y @ params["w_proj"] + params["b_proj"]
    return y.reshape(B, T, C)


# --------------------------------- main -------------------------------------
if __name__ == "__main__":
    B, T, d_model, num_heads = 2, 8, 32, 4

    key = jax.random.PRNGKey(0)
    k_x, k_wq, k_bq, k_wp, k_bp = jax.random.split(key, 5)

    params = {
        "w_qkv": 0.02 * jax.random.normal(k_wq, (d_model, 3 * d_model), jnp.float32),
        "b_qkv": 0.02 * jax.random.normal(k_bq, (3 * d_model,), jnp.float32),
        "w_proj": 0.02 * jax.random.normal(k_wp, (d_model, d_model), jnp.float32),
        "b_proj": 0.02 * jax.random.normal(k_bp, (d_model,), jnp.float32),
    }
    x = jax.random.normal(k_x, (B, T, d_model), jnp.float32)

    out = mha_forward(params, x, num_heads)
    out = jax.block_until_ready(out)

    ref = mha_reference(params, x, num_heads)
    assert out.shape == (B, T, d_model)
    # bf16 MXU inputs (default) need a looser tolerance than pure f32.
    if USE_BF16_MXU:
        rtol, atol = 5e-2, 1e-2
    else:
        rtol, atol = 1e-3, 1e-4
    assert jnp.allclose(out, ref, rtol=rtol, atol=atol), "mismatch vs reference"

    print("KERNEL_OK")
</pallas_src>

<mosaic_0001>
module attributes {stable_mosaic.version = 11 : i64} {
  func.func @_linear_kernel(%arg0: i32, %arg1: i32, %arg2: i32, %arg3: memref<16x32xbf16, #tpu.memory_space<vmem>>, %arg4: memref<32x96xbf16, #tpu.memory_space<vmem>>, %arg5: memref<1x96xf32, #tpu.memory_space<vmem>>, %arg6: memref<16x96xf32, #tpu.memory_space<vmem>>, %arg7: memref<16x96xf32, #tpu.memory_space<vmem>>) attributes {dimension_semantics = [#tpu.dimension_semantics<parallel>, #tpu.dimension_semantics<parallel>, #tpu.dimension_semantics<arbitrary>], iteration_bounds = array<i64: 1, 1, 1>, scalar_prefetch = 0 : i64, scratch_operands = 1 : i64, tpu.core_type = #tpu.core_type<tc>, window_params = [{transform_indices = @transform_0, window_bounds = array<i64: 16, 32>}, {transform_indices = @transform_1, window_bounds = array<i64: 32, 96>}, {transform_indices = @transform_2, window_bounds = array<i64: 1, 96>}, {transform_indices = @transform_3, window_bounds = array<i64: 16, 96>}]} {
    %c0_i32 = arith.constant 0 : i32
    %0 = arith.cmpi eq, %arg2, %c0_i32 : i32
    %1 = arith.extui %0 : i1 to i32
    %c0_i32_0 = arith.constant 0 : i32
    %2 = arith.cmpi ne, %1, %c0_i32_0 : i32
    scf.if %2 {
      %cst_10 = arith.constant 0.000000e+00 : f32
      %12 = vector.broadcast %cst_10 : f32 to vector<16x96xf32>
      %c0_11 = arith.constant 0 : index
      %c0_12 = arith.constant 0 : index
      %13 = vector.load %arg7[%c0_11, %c0_12] : memref<16x96xf32, #tpu.memory_space<vmem>>, vector<16x96xf32>
      tpu.vector_store %arg7[%c0_11, %c0_12], %12 {strides = array<i32>} : memref<16x96xf32, #tpu.memory_space<vmem>>, vector<16x96xf32>,
    } else {
    }
    %c0 = arith.constant 0 : index
    %c0_1 = arith.constant 0 : index
    %3 = vector.load %arg7[%c0, %c0_1] : memref<16x96xf32, #tpu.memory_space<vmem>>, vector<16x96xf32>
    %c0_2 = arith.constant 0 : index
    %c0_3 = arith.constant 0 : index
    %4 = vector.load %arg3[%c0_2, %c0_3] : memref<16x32xbf16, #tpu.memory_space<vmem>>, vector<16x32xbf16>
    %c0_4 = arith.constant 0 : index
    %c0_5 = arith.constant 0 : index
    %5 = vector.load %arg4[%c0_4, %c0_5] : memref<32x96xbf16, #tpu.memory_space<vmem>>, vector<32x96xbf16>
    %cst = arith.constant dense<0.000000e+00> : vector<16x96xf32>
    %6 = tpu.matmul %4, %5, %cst {dimension_numbers = #tpu.dot_dimension_numbers<[1], [0], [0], [1], [0, 0, 1, 1], [], []>} : vector<16x32xbf16>, vector<32x96xbf16>, vector<16x96xf32> -> vector<16x96xf32>
    %7 = arith.addf %3, %6 : vector<16x96xf32>
    %c0_6 = arith.constant 0 : index
    %c0_7 = arith.constant 0 : index
    %8 = vector.load %arg7[%c0_6, %c0_7] : memref<16x96xf32, #tpu.memory_space<vmem>>, vector<16x96xf32>
    tpu.vector_store %arg7[%c0_6, %c0_7], %7 {strides = array<i32>} : memref<16x96xf32, #tpu.memory_space<vmem>>, vector<16x96xf32>,
    %c0_i32_8 = arith.constant 0 : i32
    %9 = arith.cmpi eq, %arg2, %c0_i32_8 : i32
    %10 = arith.extui %9 : i1 to i32
    %c0_i32_9 = arith.constant 0 : i32
    %11 = arith.cmpi ne, %10, %c0_i32_9 : i32
    scf.if %11 {
      %c0_10 = arith.constant 0 : index
      %c0_11 = arith.constant 0 : index
      %12 = vector.load %arg7[%c0_10, %c0_11] : memref<16x96xf32, #tpu.memory_space<vmem>>, vector<16x96xf32>
      %c0_12 = arith.constant 0 : index
      %c0_13 = arith.constant 0 : index
      %13 = vector.load %arg5[%c0_12, %c0_13] : memref<1x96xf32, #tpu.memory_space<vmem>>, vector<1x96xf32>
      %14 = vector.broadcast %13 : vector<1x96xf32> to vector<16x96xf32>
      %15 = arith.addf %12, %14 : vector<16x96xf32>
      %c0_14 = arith.constant 0 : index
      %c0_15 = arith.constant 0 : index
      %16 = vector.load %arg6[%c0_14, %c0_15] : memref<16x96xf32, #tpu.memory_space<vmem>>, vector<16x96xf32>
      tpu.vector_store %arg6[%c0_14, %c0_15], %15 {strides = array<i32>} : memref<16x96xf32, #tpu.memory_space<vmem>>, vector<16x96xf32>,
    } else {
    }
    return
  }
  func.func @transform_0(%arg0: i32, %arg1: i32, %arg2: i32) -> (i32, i32) {
    %c0_i32 = arith.constant 0 : i32
    return %arg0, %arg2 : i32, i32
  }
  func.func @transform_1(%arg0: i32, %arg1: i32, %arg2: i32) -> (i32, i32) {
    %c0_i32 = arith.constant 0 : i32
    return %arg2, %arg1 : i32, i32
  }
  func.func @transform_2(%arg0: i32, %arg1: i32, %arg2: i32) -> (i32, i32) {
    %c0_i32 = arith.constant 0 : i32
    %c0_i32_0 = arith.constant 0 : i32
    return %c0_i32, %arg1 : i32, i32
  }
  func.func @transform_3(%arg0: i32, %arg1: i32, %arg2: i32) -> (i32, i32) {
    %c0_i32 = arith.constant 0 : i32
    return %arg0, %arg1 : i32, i32
  }
}

</mosaic_0001>

<llo_original>
// kernel: tpu_custom_call.1
$region0: #{tpu_custom_call.1}
  #allocation0 [shape = 'u32[]', space=smem, size = 0x4, offset = 0x4, fixed_abs, tag = 'smem constant byte address 0x4 - core index']
  #allocation1 [shape = 'u32[72,128]{1,0:T(1,128)}', space=vmem, size = 0x9000, scoped, tag = 'internal scratch']
  #allocation2 [shape = 'f32[16,96]{1,0:T(8,128)}', space=vmem, size = 0x2000, scoped, tag = 'scratch operand']
  %s0 = inlined_call_operand.hbm [shape: bf16[16,32], index: 0, kind: input, shape index: {}]
  %s1 = inlined_call_operand.hbm [shape: bf16[32,96], index: 1, kind: input, shape index: {}]
  %s2 = inlined_call_operand.vmem [shape: f32[1,96], index: 2, kind: input, shape index: {}]
  %s3 = inlined_call_operand.hbm [shape: f32[16,96], index: 3, kind: output, shape index: {}]
  %s4 = sld [smem:[#allocation0]]
  $region38: #{tpu_custom_call.1} parent=0
    _
  %s6 = ssub.s32 1, %s4
  %s7 = scalar_select 0, %s6, %s4
  $region1: #{tpu_custom_call.1} parent=0
    #allocation3 [shape = 'u8[4096]{0}', space=vmem, size = 0x1000, scoped, tag = 'input window, operand 0, single buffered']
    #allocation4 [shape = 's32[1]{0}', space=sflag, size = 0x4, scoped, tag = 'scoped memory for tpu_custom_call.1']
    #allocation5 [shape = 's32[1]{0}', space=sflag, size = 0x4, scoped, tag = 'scoped memory for tpu_custom_call.1']
    #allocation6 [shape = 'u8[8192]{0}', space=vmem, size = 0x2000, scoped, tag = 'input window, operand 1, single buffered']
    #allocation7 [shape = 's32[1]{0}', space=sflag, size = 0x4, scoped, tag = 'scoped memory for tpu_custom_call.1']
    #allocation8 [shape = 'u8[8192]{0}', space=vmem, size = 0x2000, scoped, tag = 'output window, operand 0, single buffered']
    %8 = vsyncpa [#allocation4], 0
    %9 = vsyncpa [#allocation7], 0
    %10 = vsyncpa [#allocation5], 0
    // Predicated region
    $region2: #{tpu_custom_call.1} parent=1 // pred_check
      _
    $region3: #{tpu_custom_call.1} parent=1 // pred_check_branch
      %12 = sbr.rel (0) target = $region5
    $region4: #{tpu_custom_call.1} parent=1 // pred_region
      %14 = vsyncadd [#allocation4], 0
      %s15 = sshll.u32 %s0, 4
      %s16 = int_to_ptr.hbm [resolvable:$true] %s15
      %s17 = sshll.u32 [#allocation3], 4
      %s18 = int_to_ptr.vmem [resolvable:$true] %s17
      %23 = dma.hbm_to_vmem [thread:$0]  %s16, 128, %s18, [#allocation4], 64, 64, 4
    $region5: #{tpu_custom_call.1} parent=1 // pred_fallthru
      _
    // Predicated region
    $region6: #{tpu_custom_call.1} parent=1 // pred_check
      _
    $region7: #{tpu_custom_call.1} parent=1 // pred_check_branch
      %25 = sbr.rel (0) target = $region9
    $region8: #{tpu_custom_call.1} parent=1 // pred_region
      %27 = vsyncadd [#allocation7], 0
      %s28 = sshll.u32 %s1, 4
      %s29 = int_to_ptr.hbm [resolvable:$true] %s28
      %s30 = sshll.u32 [#allocation6], 4
      %s31 = int_to_ptr.vmem [resolvable:$true] %s30
      %36 = dma.hbm_to_vmem [thread:$0]  %s29, 256, %s31, [#allocation7], 64, 64, 4
    $region9: #{tpu_custom_call.1} parent=1 // pred_fallthru
      _
    // Predicated region
    $region10: #{tpu_custom_call.1} parent=1 // pred_check
      _
    $region11: #{tpu_custom_call.1} parent=1 // pred_check_branch
      %38 = sbr.rel (0) target = $region13
    $region12: #{tpu_custom_call.1} parent=1 // pred_region
      _
    $region13: #{tpu_custom_call.1} parent=1 // pred_fallthru
      _
    // Predicated region
    $region14: #{tpu_custom_call.1} parent=1 // pred_check
      _
    $region15: #{tpu_custom_call.1} parent=1 // pred_check_branch
      %40 = sbr.rel (0) target = $region17
    $region16: #{tpu_custom_call.1} parent=1 // pred_region
      %42 = dma.done [#allocation4], 128
    $region17: #{tpu_custom_call.1} parent=1 // pred_fallthru
      _
    // Predicated region
    $region18: #{tpu_custom_call.1} parent=1 // pred_check
      _
    $region19: #{tpu_custom_call.1} parent=1 // pred_check_branch
      %44 = sbr.rel (0) target = $region21
    $region20: #{tpu_custom_call.1} parent=1 // pred_region
      %46 = dma.done [#allocation7], 256
    $region21: #{tpu_custom_call.1} parent=1 // pred_fallthru
      _
    %p48 = scmp.eq.s32.totalorder 0, 0
    // Predicated region
    $region22: #{tpu_custom_call.1} parent=1 // pred_check
      %p49 = pneg %p48
    $region23: #{tpu_custom_call.1} parent=1 // pred_check_branch
      %51 = sbr.rel (%p49) target = $region25
    $region24: #{tpu_custom_call.1} parent=1 // pred_region
      %vm52 = vcmask 785408
      %53 = vst.msk [vmem:[#allocation2] sm:$0xff] %vm52, 0.0
      %54 = vst.msk [vmem:[#allocation2 + $0x8] sm:$0xff] %vm52, 0.0
    $region25: #{tpu_custom_call.1} parent=1 // pred_fallthru
      _
    %v55 = vld [vmem:[#allocation2] sm:$0xff]
    %v56 = vld [vmem:[#allocation2 + $0x8] sm:$0xff]
    %v57 = vld [vmem:[#allocation3] sm:$0xf]
    %v58 = vld [vmem:[#allocation3 + $0x4] sm:$0xf]
    %v59 = vld [vmem:[#allocation6] sm:$0xf]
    %v60 = vld [vmem:[#allocation6 + $0x4] sm:$0xf]
    %v61 = vld [vmem:[#allocation6 + $0x8] sm:$0xf]
    %v62 = vld [vmem:[#allocation6 + $0xc] sm:$0xf]
    %v65 = vunpack.c.l.b16 %v57
    %v66 = vunpack.c.l.b16 %v58
    %v67 = vpack.c.b16 %v66, %v65
    %v72 = vunpack.c.l.b16 %v59
    %v73 = vunpack.c.l.b16 %v60
    %v74 = vunpack.c.l.b16 %v61
    %v75 = vunpack.c.l.b16 %v62
    %v76 = vpack.c.b16 %v73, %v72
    %v77 = vpack.c.b16 %v75, %v74
    %vm80 = vcmask 261120
    %v82 = vsel %vm80, %v67, 0
    %84 = vmatpush.bf16.msra.mxu0 0
    %85 = vmatpush.bf16.msra.mxu0 0
    %86 = vmatpush.bf16.msra.mxu0 0
    %87 = vmatpush.bf16.msra.mxu0 0
    %88 = vmatpush.bf16.msra.mxu0 0
    %89 = vmatpush.bf16.msra.mxu0 0
    %90 = vmatpush.bf16.msra.mxu0 %v77
    %91 = vmatpush.bf16.msra.mxu0 %v76
    %92 = vmatmul.bf16.gmra.mxu0 %v82
    %v93 = vpop.f32.mrf.mxu0
    %v94 = vadd.f32 0.0, %v93
    %v95 = vpop.f32.mrf.mxu0
    %v96 = vadd.f32 0.0, %v95
    %97 = vdwg.mxu0
    %v98 = vadd.f32 %v55, %v94
    %v99 = vadd.f32 %v56, %v96
    %vm100 = vcmask 785408
    %101 = vst.msk [vmem:[#allocation2] sm:$0xff] %vm100, %v98
    %102 = vst.msk [vmem:[#allocation2 + $0x8] sm:$0xff] %vm100, %v99
    // Predicated region
    $region26: #{tpu_custom_call.1} parent=1 // pred_check
      %p103 = pneg %p48
    $region27: #{tpu_custom_call.1} parent=1 // pred_check_branch
      %105 = sbr.rel (%p103) target = $region29
    $region28: #{tpu_custom_call.1} parent=1 // pred_region
      %v106 = vld [vmem:[#allocation2] sm:$0xff]
      %v107 = vld [vmem:[#allocation2 + $0x8] sm:$0xff]
      %v108 = vld [vmem:[%s2] sm:$0x1]
      %v110 = vperm.slane %v108, 0
      %v112 = vadd.f32 %v106, %v110
      %v113 = vadd.f32 %v107, %v110
      %114 = vst.msk [vmem:[#allocation8] sm:$0xff] %vm100, %v112
      %115 = vst.msk [vmem:[#allocation8 + $0x8] sm:$0xff] %vm100, %v113
    $region29: #{tpu_custom_call.1} parent=1 // pred_fallthru
      _
    // Predicated region
    $region30: #{tpu_custom_call.1} parent=1 // pred_check
      _
    $region31: #{tpu_custom_call.1} parent=1 // pred_check_branch
      %117 = sbr.rel (0) target = $region33
    $region32: #{tpu_custom_call.1} parent=1 // pred_region
      %119 = vsyncadd [#allocation5], 0
      %s120 = sshll.u32 [#allocation8], 4
      %s121 = int_to_ptr.vmem [resolvable:$true] %s120
      %s122 = sshll.u32 %s3, 4
      %s123 = int_to_ptr.hbm [resolvable:$true] %s122
      %128 = dma.vmem_to_hbm [thread:$0]  %s121, 256, %s123, [#allocation5], 128, 128, 8
    $region33: #{tpu_custom_call.1} parent=1 // pred_fallthru
      _
    // Predicated region
    $region34: #{tpu_custom_call.1} parent=1 // pred_check
      _
    $region35: #{tpu_custom_call.1} parent=1 // pred_check_branch
      %130 = sbr.rel (0) target = $region37
    $region36: #{tpu_custom_call.1} parent=1 // pred_region
      %132 = dma.done [#allocation5], 256
    $region37: #{tpu_custom_call.1} parent=1 // pred_fallthru
      _
    %133 = vsyncpa [#allocation4], 1
    %134 = vsyncpa [#allocation7], 1
    %135 = vsyncpa [#allocation5], 1

</llo_original>
